<compile_context>
chip_gen: v7x
topology: tpu7x:2x2x1
jax: 0.10.0
libtpu: 0.0.40
codegen_flags: <defaults>
</compile_context>

<pallas_src>
import functools
import math

import jax
import jax.numpy as jnp
import numpy as np
from jax.experimental import pallas as pl
from jax.experimental.pallas import tpu as pltpu


def _round_up(x, m):
    return ((x + m - 1) // m) * m


def _mha_pool_kernel(q_ref, k_ref, wq_ref, bq_ref, wkv_ref, bkv_ref,
                     out_ref, attn_ref,
                     *, n_head, d_k, d_v, k_width, k_width_pad,
                     temperature, use_bf16):
    TB = q_ref.shape[0]
    l = k_ref.shape[1]                    # true (unpadded) sequence length
    d_ko = k_ref.shape[2]
    l_pad = attn_ref.shape[2]             # lane-dense attn tile width
    H = n_head

    inv_temp = jnp.float32(1.0 / temperature)
    mm_dtype = jnp.bfloat16 if use_bf16 else jnp.float32

    q = q_ref[...]                                       # (TB, d_q)
    k2 = k_ref[...].reshape(TB * l, d_ko)                # (TB*l, d_ko)

    # ---- projections on the MXU (K and V fused; 1/T folded into Q once) ----
    qs = (jnp.dot(q.astype(mm_dtype), wq_ref[...].astype(mm_dtype),
                  preferred_element_type=jnp.float32)
          + bq_ref[...]) * inv_temp                      # (TB, H*d_k) f32
    kv = (jnp.dot(k2.astype(mm_dtype), wkv_ref[...].astype(mm_dtype),
                  preferred_element_type=jnp.float32)
          + bkv_ref[...])                                # (TB*l, k_width_pad + H*d_v)
    kv = kv.reshape(TB, l, k_width_pad + H * d_v)

    k_all = kv[:, :, :k_width]                           # prefix slice (no shift)
    v_all = kv[:, :, k_width_pad:k_width_pad + H * d_v]  # 128-aligned start when padded

    # One full-lane-width multiply for every head's logits; per-head logits are
    # segmented lane reductions of `prod` (H is small and static).
    prod = qs[:, None, :] * k_all                        # (TB, l, H*d_k)

    if l_pad > l:
        zero_tail = jnp.zeros((TB, l_pad - l), jnp.float32)   # hoisted out of loop

    p_parts = []
    for h in range(H):
        logits = jnp.sum(prod[:, :, h * d_k:(h + 1) * d_k], axis=2)   # (TB, l)
        m = jnp.max(logits, axis=1, keepdims=True)
        e = jnp.exp(logits - m)
        s = jnp.sum(e, axis=1, keepdims=True)
        p = e * pl.reciprocal(s, approx=False)                        # (TB, l)

        # lane-dense attn tile store (pad columns written as zeros, sliced off
        # in the wrapper)
        if l_pad > l:
            attn_ref[h] = jnp.concatenate([p, zero_tail], axis=1)
        else:
            attn_ref[h] = p

        # broadcast p over this head's d_v value lanes for the fused pooling
        p_parts.append(jnp.broadcast_to(p[:, :, None], (TB, l, d_v)))

    p_rep = p_parts[0] if H == 1 else jnp.concatenate(p_parts, axis=2)  # (TB, l, H*d_v)
    # pooled output for all heads at once: full-lane multiply + sublane reduce
    out_ref[...] = jnp.sum(p_rep * v_all, axis=1)                       # (TB, H*d_v)


def multihead_att_pool(q, k, params, *, n_head, block_b=None, use_bf16=True):
    """q: (b, d_q_original), k: (b, l, d_k_original).

    Returns (output (b, n_head*d_v), attn (n_head*b, l)) matching the PyTorch
    MultiheadAttPoolLayer in eval mode with mask=None.
    """
    b, d_q = q.shape
    bk_, l, d_ko = k.shape
    assert bk_ == b
    H = n_head
    d_k = d_ko // n_head
    d_v = d_k
    temperature = float(np.power(d_k, 0.5))

    # Fused [K | V] projection, with the V block lane-aligned (zero columns
    # between K and V) when the fused width spills past one 128-lane block.
    k_width = H * d_k
    if (k_width % 128 != 0) and (k_width + H * d_v) > 128:
        k_width_pad = _round_up(k_width, 128)
    else:
        k_width_pad = k_width
    kv_w = k_width_pad + H * d_v

    # Lane-dense attn output width (padding lives only in the OUTPUT array;
    # it is produced in-register inside the kernel -- k is never padded on l).
    l_pad = _round_up(l, 128)

    # Batch: round up to the 8-sublane granule only (a no-op when b % 8 == 0).
    b_pad = _round_up(b, 8)
    if b_pad != b:
        # TODO(synk): for large b with b % 8 != 0 this still copies k once;
        # partial-block handling along batch could remove it.
        q = jnp.pad(q, ((0, b_pad - b), (0, 0)))
        k = jnp.pad(k, ((0, b_pad - b), (0, 0), (0, 0)))

    # ---- explicit VMEM budget -> block_b and scoped VMEM limit ----
    try:
        vmem_cap = int(pltpu.get_tpu_info().vmem_capacity_bytes)
    except Exception:
        vmem_cap = 64 * 1024 * 1024            # v7x-safe fallback
    vmem_limit = max(32 << 20, min(vmem_cap - (16 << 20), 96 << 20))
    budget = int(vmem_limit * 0.75)            # ~25% headroom

    w_bytes = 2 if use_bf16 else 4

    def footprint(tb):
        f = 0
        f += 2 * tb * l * d_ko * 4                         # k block (double-buffered)
        f += 2 * tb * d_q * 4                              # q block
        f += 2 * tb * H * d_v * 4                          # out block
        f += 2 * H * tb * l_pad * 4                        # attn block
        f += 2 * (d_q * H * d_k + d_ko * kv_w) * w_bytes   # weights
        f += 2 * (H * d_k + kv_w) * 4                      # biases
        f += tb * l * (kv_w + k_width + 2 * H * d_v) * 4   # kv, prod, p_rep, product
        return f

    if block_b is None:
        block_b = 8
        # keep >= 4 grid steps when the batch allows it (v7x megacore: both
        # TensorCores get at least 2 steps each)
        cap_steps = max(8, _round_up(-(-b_pad // 4), 8))
        max_block = min(512, b_pad, cap_steps)
        cand = 16
        while cand <= max_block and footprint(cand) <= budget:
            block_b = cand
            cand += 8
    else:
        block_b = _round_up(block_b, 8)
    grid = (pl.cdiv(b_pad, block_b),)

    wq, bq = params["wq"], params["bq"]
    if k_width_pad > k_width:
        zcols = jnp.zeros((d_ko, k_width_pad - k_width), jnp.float32)
        zbias = jnp.zeros((1, k_width_pad - k_width), jnp.float32)
        wkv = jnp.concatenate([params["wk"], zcols, params["wv"]], axis=1)
        bkv = jnp.concatenate([params["bk"], zbias, params["bv"]], axis=1)
    else:
        wkv = jnp.concatenate([params["wk"], params["wv"]], axis=1)
        bkv = jnp.concatenate([params["bk"], params["bv"]], axis=1)
    if use_bf16:
        wq = wq.astype(jnp.bfloat16)
        wkv = wkv.astype(jnp.bfloat16)

    kernel = functools.partial(
        _mha_pool_kernel, n_head=H, d_k=d_k, d_v=d_v,
        k_width=k_width, k_width_pad=k_width_pad,
        temperature=temperature, use_bf16=use_bf16)

    cost = pl.CostEstimate(
        flops=int(2 * b_pad * d_q * H * d_k
                  + 2 * b_pad * l * d_ko * kv_w
                  + 2 * b_pad * l * H * d_k
                  + 2 * b_pad * l * H * d_v),
        transcendentals=int(b_pad * H * l),
        bytes_accessed=int(4 * b_pad * d_q + 4 * b_pad * l * d_ko
                           + w_bytes * (d_q * H * d_k + d_ko * kv_w)
                           + 4 * (H * d_k + kv_w)
                           + 4 * b_pad * H * d_v + 4 * H * b_pad * l_pad),
    )

    out_full, attn_full = pl.pallas_call(
        kernel,
        grid=grid,
        in_specs=[
            pl.BlockSpec((block_b, d_q), lambda i: (i, 0)),
            pl.BlockSpec((block_b, l, d_ko), lambda i: (i, 0, 0)),
            pl.BlockSpec(wq.shape, lambda i: (0, 0)),
            pl.BlockSpec(bq.shape, lambda i: (0, 0)),
            pl.BlockSpec(wkv.shape, lambda i: (0, 0)),
            pl.BlockSpec(bkv.shape, lambda i: (0, 0)),
        ],
        out_specs=(
            pl.BlockSpec((block_b, H * d_v), lambda i: (i, 0)),
            pl.BlockSpec((H, block_b, l_pad), lambda i: (0, i, 0)),
        ),
        out_shape=(
            jax.ShapeDtypeStruct((b_pad, H * d_v), jnp.float32),
            jax.ShapeDtypeStruct((H, b_pad, l_pad), jnp.float32),
        ),
        compiler_params=pltpu.CompilerParams(
            dimension_semantics=("parallel",),
            vmem_limit_bytes=int(vmem_limit)),
        cost_estimate=cost,
    )(q, k, wq, bq, wkv, bkv)

    out = out_full[:b]
    # (H, b, l) -> (H*b, l): row index = h*b + i, matching the PyTorch
    # permute(1,0,2).view(n_head*b, ...) layout.
    attn = attn_full[:, :b, :l].reshape(H * b, l)
    return out, attn


def init_params(key, n_head, d_q_original, d_k_original):
    """Deterministic synthetic init matching the module's __init__ distributions."""
    d_k = d_k_original // n_head
    d_v = d_k
    keys = jax.random.split(key, 6)
    std_q = math.sqrt(2.0 / (d_q_original + d_k))
    std_k = math.sqrt(2.0 / (d_k_original + d_k))
    std_v = math.sqrt(2.0 / (d_k_original + d_v))
    wq = std_q * jax.random.normal(keys[0], (d_q_original, n_head * d_k), jnp.float32)
    wk = std_k * jax.random.normal(keys[1], (d_k_original, n_head * d_k), jnp.float32)
    wv = std_v * jax.random.normal(keys[2], (d_k_original, n_head * d_v), jnp.float32)
    # PyTorch Linear default bias init: U(-1/sqrt(fan_in), 1/sqrt(fan_in))
    bnd_q = 1.0 / math.sqrt(d_q_original)
    bnd_k = 1.0 / math.sqrt(d_k_original)
    bq = jax.random.uniform(keys[3], (1, n_head * d_k), jnp.float32, -bnd_q, bnd_q)
    bk = jax.random.uniform(keys[4], (1, n_head * d_k), jnp.float32, -bnd_k, bnd_k)
    bv = jax.random.uniform(keys[5], (1, n_head * d_v), jnp.float32, -bnd_k, bnd_k)
    return dict(wq=wq, bq=bq, wk=wk, bk=bk, wv=wv, bv=bv)


def reference(q, k, params, n_head):
    """Plain-JAX mirror of the PyTorch forward (eval mode) for verification."""
    b, _ = q.shape
    _, l, d_ko = k.shape
    d_k = d_ko // n_head
    d_v = d_k
    temp = np.power(d_k, 0.5)
    qs = (q @ params["wq"] + params["bq"]).reshape(b, n_head, d_k)
    kk = k.reshape(b * l, d_ko)
    ks = (kk @ params["wk"] + params["bk"]).reshape(b, l, n_head, d_k)
    vs = (kk @ params["wv"] + params["bv"]).reshape(b, l, n_head, d_v)
    qs = jnp.transpose(qs, (1, 0, 2)).reshape(n_head * b, d_k)
    ks = jnp.transpose(ks, (2, 0, 1, 3)).reshape(n_head * b, l, d_k)
    vs = jnp.transpose(vs, (2, 0, 1, 3)).reshape(n_head * b, l, d_v)
    attn = jnp.sum(qs[:, None, :] / temp * ks, axis=2)
    attn = jax.nn.softmax(attn, axis=1)
    out = jnp.sum(attn[:, :, None] * vs, axis=1)
    out = jnp.transpose(out.reshape(n_head, b, d_v), (1, 0, 2)).reshape(b, n_head * d_v)
    return out, attn


if __name__ == "__main__":
    n_head = 2
    d_q_original = 32
    d_k_original = 32
    b, l = 2, 8

    root = jax.random.PRNGKey(0)
    k_params, k_q, k_k = jax.random.split(root, 3)
    params = init_params(k_params, n_head, d_q_original, d_k_original)

    q = jax.random.normal(k_q, (b, d_q_original), jnp.float32)
    kv = jax.random.normal(k_k, (b, l, d_k_original), jnp.float32)

    out_ref, attn_ref = reference(q, kv, params, n_head)

    # Fast path (default): bf16 MXU matmuls, f32 accumulation / softmax.
    out, attn = multihead_att_pool(q, kv, params, n_head=n_head, use_bf16=True)
    out = jax.block_until_ready(out)
    attn = jax.block_until_ready(attn)
    assert np.allclose(np.asarray(out), np.asarray(out_ref), atol=5e-2, rtol=5e-2)
    assert np.allclose(np.asarray(attn), np.asarray(attn_ref), atol=5e-2, rtol=5e-2)

    # Exact f32 path: matches the f32 reference to tight tolerance.
    out32, attn32 = multihead_att_pool(q, kv, params, n_head=n_head, use_bf16=False)
    out32 = jax.block_until_ready(out32)
    attn32 = jax.block_until_ready(attn32)
    assert np.allclose(np.asarray(out32), np.asarray(out_ref), atol=1e-4, rtol=1e-4)
    assert np.allclose(np.asarray(attn32), np.asarray(attn_ref), atol=1e-4, rtol=1e-4)

    print("KERNEL_OK")
</pallas_src>

<mosaic_0001>
module attributes {stable_mosaic.version = 11 : i64} {
  func.func @_mha_pool_kernel(%arg0: i32, %arg1: memref<8x32xf32, #tpu.memory_space<vmem>>, %arg2: memref<8x8x32xf32, #tpu.memory_space<vmem>>, %arg3: memref<32x32xbf16, #tpu.memory_space<vmem>>, %arg4: memref<1x32xf32, #tpu.memory_space<vmem>>, %arg5: memref<32x64xbf16, #tpu.memory_space<vmem>>, %arg6: memref<1x64xf32, #tpu.memory_space<vmem>>, %arg7: memref<8x32xf32, #tpu.memory_space<vmem>>, %arg8: memref<2x8x128xf32, #tpu.memory_space<vmem>>) attributes {dimension_semantics = [#tpu.dimension_semantics<parallel>], iteration_bounds = array<i64: 1>, scalar_prefetch = 0 : i64, scratch_operands = 0 : i64, tpu.core_type = #tpu.core_type<tc>, window_params = [{transform_indices = @transform_0, window_bounds = array<i64: 8, 32>}, {transform_indices = @transform_1, window_bounds = array<i64: 8, 8, 32>}, {pipeline_mode = #tpu.pipeline_mode<synchronous>, transform_indices = @transform_2, window_bounds = array<i64: 32, 32>}, {pipeline_mode = #tpu.pipeline_mode<synchronous>, transform_indices = @transform_3, window_bounds = array<i64: 1, 32>}, {pipeline_mode = #tpu.pipeline_mode<synchronous>, transform_indices = @transform_4, window_bounds = array<i64: 32, 64>}, {pipeline_mode = #tpu.pipeline_mode<synchronous>, transform_indices = @transform_5, window_bounds = array<i64: 1, 64>}, {transform_indices = @transform_6, window_bounds = array<i64: 8, 32>}, {transform_indices = @transform_7, window_bounds = array<i64: 2, 8, 128>}]} {
    %c0 = arith.constant 0 : index
    %c0_0 = arith.constant 0 : index
    %0 = vector.load %arg1[%c0, %c0_0] : memref<8x32xf32, #tpu.memory_space<vmem>>, vector<8x32xf32>
    %c0_1 = arith.constant 0 : index
    %c0_2 = arith.constant 0 : index
    %c0_3 = arith.constant 0 : index
    %1 = vector.load %arg2[%c0_1, %c0_2, %c0_3] : memref<8x8x32xf32, #tpu.memory_space<vmem>>, vector<8x8x32xf32>
    %2 = vector.shape_cast %1 : vector<8x8x32xf32> to vector<64x32xf32>
    %3 = arith.truncf %0 : vector<8x32xf32> to vector<8x32xbf16>
    %c0_4 = arith.constant 0 : index
    %c0_5 = arith.constant 0 : index
    %4 = vector.load %arg3[%c0_4, %c0_5] : memref<32x32xbf16, #tpu.memory_space<vmem>>, vector<32x32xbf16>
    %cst = arith.constant dense<0.000000e+00> : vector<8x32xf32>
    %5 = tpu.matmul %3, %4, %cst {dimension_numbers = #tpu.dot_dimension_numbers<[1], [0], [0], [1], [0, 0, 1, 1], [], []>} : vector<8x32xbf16>, vector<32x32xbf16>, vector<8x32xf32> -> vector<8x32xf32>
    %c0_6 = arith.constant 0 : index
    %c0_7 = arith.constant 0 : index
    %6 = vector.load %arg4[%c0_6, %c0_7] : memref<1x32xf32, #tpu.memory_space<vmem>>, vector<1x32xf32>
    %7 = vector.broadcast %6 : vector<1x32xf32> to vector<8x32xf32>
    %8 = arith.addf %5, %7 : vector<8x32xf32>
    %cst_8 = arith.constant 2.500000e-01 : f32
    %9 = vector.broadcast %cst_8 : f32 to vector<8x32xf32>
    %10 = arith.mulf %8, %9 : vector<8x32xf32>
    %11 = arith.truncf %2 : vector<64x32xf32> to vector<64x32xbf16>
    %c0_9 = arith.constant 0 : index
    %c0_10 = arith.constant 0 : index
    %12 = vector.load %arg5[%c0_9, %c0_10] : memref<32x64xbf16, #tpu.memory_space<vmem>>, vector<32x64xbf16>
    %cst_11 = arith.constant dense<0.000000e+00> : vector<64x64xf32>
    %13 = tpu.matmul %11, %12, %cst_11 {dimension_numbers = #tpu.dot_dimension_numbers<[1], [0], [0], [1], [0, 0, 1, 1], [], []>} : vector<64x32xbf16>, vector<32x64xbf16>, vector<64x64xf32> -> vector<64x64xf32>
    %c0_12 = arith.constant 0 : index
    %c0_13 = arith.constant 0 : index
    %14 = vector.load %arg6[%c0_12, %c0_13] : memref<1x64xf32, #tpu.memory_space<vmem>>, vector<1x64xf32>
    %15 = vector.broadcast %14 : vector<1x64xf32> to vector<64x64xf32>
    %16 = arith.addf %13, %15 : vector<64x64xf32>
    %17 = vector.shape_cast %16 : vector<64x64xf32> to vector<8x8x64xf32>
    %18 = vector.extract_strided_slice %17 {offsets = [0, 0, 0], sizes = [8, 8, 32], strides = [1, 1, 1]} : vector<8x8x64xf32> to vector<8x8x32xf32>
    %19 = vector.extract_strided_slice %17 {offsets = [0, 0, 32], sizes = [8, 8, 32], strides = [1, 1, 1]} : vector<8x8x64xf32> to vector<8x8x32xf32>
    %20 = vector.shape_cast %10 : vector<8x32xf32> to vector<8x1x32xf32>
    %21 = vector.broadcast %20 : vector<8x1x32xf32> to vector<8x8x32xf32>
    %22 = arith.mulf %21, %18 : vector<8x8x32xf32>
    %cst_14 = arith.constant 0.000000e+00 : f32
    %23 = vector.broadcast %cst_14 : f32 to vector<8x120xf32>
    %24 = vector.extract_strided_slice %22 {offsets = [0, 0, 0], sizes = [8, 8, 16], strides = [1, 1, 1]} : vector<8x8x32xf32> to vector<8x8x16xf32>
    %cst_15 = arith.constant dense<0.000000e+00> : vector<8x8xf32>
    %25 = vector.multi_reduction <add>, %24, %cst_15 [2] : vector<8x8x16xf32> to vector<8x8xf32>
    %cst_16 = arith.constant dense<0xFF800000> : vector<8xf32>
    %26 = vector.multi_reduction <maximumf>, %25, %cst_16 [1] : vector<8x8xf32> to vector<8xf32>
    %27 = vector.shape_cast %26 : vector<8xf32> to vector<8x1xf32>
    %28 = vector.broadcast %27 : vector<8x1xf32> to vector<8x8xf32>
    %29 = arith.subf %25, %28 : vector<8x8xf32>
    %30 = math.exp %29 : vector<8x8xf32>
    %cst_17 = arith.constant dense<0.000000e+00> : vector<8xf32>
    %31 = vector.multi_reduction <add>, %30, %cst_17 [1] : vector<8x8xf32> to vector<8xf32>
    %32 = vector.shape_cast %31 : vector<8xf32> to vector<8x1xf32>
    %33 = tpu.reciprocal %32 : vector<8x1xf32> -> vector<8x1xf32>
    %34 = vector.broadcast %33 : vector<8x1xf32> to vector<8x8xf32>
    %35 = arith.mulf %30, %34 : vector<8x8xf32>
    %36 = tpu.concatenate %35, %23 in 1 : vector<8x8xf32>, vector<8x120xf32> -> vector<8x128xf32>
    %c0_18 = arith.constant 0 : index
    %c0_19 = arith.constant 0 : index
    %c0_20 = arith.constant 0 : index
    %37 = vector.load %arg8[%c0_18, %c0_19, %c0_20] : memref<2x8x128xf32, #tpu.memory_space<vmem>>, vector<1x8x128xf32>
    %38 = vector.shape_cast %37 : vector<1x8x128xf32> to vector<8x128xf32>
    %39 = vector.shape_cast %36 : vector<8x128xf32> to vector<1x8x128xf32>
    tpu.vector_store %arg8[%c0_18, %c0_19, %c0_20], %39 {strides = array<i32>} : memref<2x8x128xf32, #tpu.memory_space<vmem>>, vector<1x8x128xf32>,
    %40 = vector.shape_cast %35 : vector<8x8xf32> to vector<8x8x1xf32>
    %41 = vector.shape_cast %40 : vector<8x8x1xf32> to vector<8x8x1xf32>
    %42 = vector.broadcast %41 : vector<8x8x1xf32> to vector<8x8x16xf32>
    %43 = vector.extract_strided_slice %22 {offsets = [0, 0, 16], sizes = [8, 8, 16], strides = [1, 1, 1]} : vector<8x8x32xf32> to vector<8x8x16xf32>
    %cst_21 = arith.constant dense<0.000000e+00> : vector<8x8xf32>
    %44 = vector.multi_reduction <add>, %43, %cst_21 [2] : vector<8x8x16xf32> to vector<8x8xf32>
    %cst_22 = arith.constant dense<0xFF800000> : vector<8xf32>
    %45 = vector.multi_reduction <maximumf>, %44, %cst_22 [1] : vector<8x8xf32> to vector<8xf32>
    %46 = vector.shape_cast %45 : vector<8xf32> to vector<8x1xf32>
    %47 = vector.broadcast %46 : vector<8x1xf32> to vector<8x8xf32>
    %48 = arith.subf %44, %47 : vector<8x8xf32>
    %49 = math.exp %48 : vector<8x8xf32>
    %cst_23 = arith.constant dense<0.000000e+00> : vector<8xf32>
    %50 = vector.multi_reduction <add>, %49, %cst_23 [1] : vector<8x8xf32> to vector<8xf32>
    %51 = vector.shape_cast %50 : vector<8xf32> to vector<8x1xf32>
    %52 = tpu.reciprocal %51 : vector<8x1xf32> -> vector<8x1xf32>
    %53 = vector.broadcast %52 : vector<8x1xf32> to vector<8x8xf32>
    %54 = arith.mulf %49, %53 : vector<8x8xf32>
    %55 = tpu.concatenate %54, %23 in 1 : vector<8x8xf32>, vector<8x120xf32> -> vector<8x128xf32>
    %c1 = arith.constant 1 : index
    %c0_24 = arith.constant 0 : index
    %c0_25 = arith.constant 0 : index
    %56 = vector.load %arg8[%c1, %c0_24, %c0_25] : memref<2x8x128xf32, #tpu.memory_space<vmem>>, vector<1x8x128xf32>
    %57 = vector.shape_cast %56 : vector<1x8x128xf32> to vector<8x128xf32>
    %58 = vector.shape_cast %55 : vector<8x128xf32> to vector<1x8x128xf32>
    tpu.vector_store %arg8[%c1, %c0_24, %c0_25], %58 {strides = array<i32>} : memref<2x8x128xf32, #tpu.memory_space<vmem>>, vector<1x8x128xf32>,
    %59 = vector.shape_cast %54 : vector<8x8xf32> to vector<8x8x1xf32>
    %60 = vector.shape_cast %59 : vector<8x8x1xf32> to vector<8x8x1xf32>
    %61 = vector.broadcast %60 : vector<8x8x1xf32> to vector<8x8x16xf32>
    %62 = tpu.concatenate %42, %61 in 2 : vector<8x8x16xf32>, vector<8x8x16xf32> -> vector<8x8x32xf32>
    %63 = arith.mulf %62, %19 : vector<8x8x32xf32>
    %cst_26 = arith.constant dense<0.000000e+00> : vector<8x32xf32>
    %64 = vector.multi_reduction <add>, %63, %cst_26 [1] : vector<8x8x32xf32> to vector<8x32xf32>
    %c0_27 = arith.constant 0 : index
    %c0_28 = arith.constant 0 : index
    %65 = vector.load %arg7[%c0_27, %c0_28] : memref<8x32xf32, #tpu.memory_space<vmem>>, vector<8x32xf32>
    tpu.vector_store %arg7[%c0_27, %c0_28], %64 {strides = array<i32>} : memref<8x32xf32, #tpu.memory_space<vmem>>, vector<8x32xf32>,
    return
  }
  func.func @transform_0(%arg0: i32) -> (i32, i32) {
    %c0_i32 = arith.constant 0 : i32
    %c0_i32_0 = arith.constant 0 : i32
    return %arg0, %c0_i32 : i32, i32
  }
  func.func @transform_1(%arg0: i32) -> (i32, i32, i32) {
    %c0_i32 = arith.constant 0 : i32
    %c0_i32_0 = arith.constant 0 : i32
    %c0_i32_1 = arith.constant 0 : i32
    return %arg0, %c0_i32, %c0_i32_0 : i32, i32, i32
  }
  func.func @transform_2(%arg0: i32) -> (i32, i32) {
    %c0_i32 = arith.constant 0 : i32
    %c0_i32_0 = arith.constant 0 : i32
    %c0_i32_1 = arith.constant 0 : i32
    return %c0_i32, %c0_i32_0 : i32, i32
  }
  func.func @transform_3(%arg0: i32) -> (i32, i32) {
    %c0_i32 = arith.constant 0 : i32
    %c0_i32_0 = arith.constant 0 : i32
    %c0_i32_1 = arith.constant 0 : i32
    return %c0_i32, %c0_i32_0 : i32, i32
  }
  func.func @transform_4(%arg0: i32) -> (i32, i32) {
    %c0_i32 = arith.constant 0 : i32
    %c0_i32_0 = arith.constant 0 : i32
    %c0_i32_1 = arith.constant 0 : i32
    return %c0_i32, %c0_i32_0 : i32, i32
  }
  func.func @transform_5(%arg0: i32) -> (i32, i32) {
    %c0_i32 = arith.constant 0 : i32
    %c0_i32_0 = arith.constant 0 : i32
    %c0_i32_1 = arith.constant 0 : i32
    return %c0_i32, %c0_i32_0 : i32, i32
  }
  func.func @transform_6(%arg0: i32) -> (i32, i32) {
    %c0_i32 = arith.constant 0 : i32
    %c0_i32_0 = arith.constant 0 : i32
    return %arg0, %c0_i32 : i32, i32
  }
  func.func @transform_7(%arg0: i32) -> (i32, i32, i32) {
    %c0_i32 = arith.constant 0 : i32
    %c0_i32_0 = arith.constant 0 : i32
    %c0_i32_1 = arith.constant 0 : i32
    return %c0_i32, %arg0, %c0_i32_0 : i32, i32, i32
  }
}

</mosaic_0001>

<llo_original>
// kernel: tpu_custom_call.1
$region0: #{tpu_custom_call.1}
  #allocation0 [shape = 'u32[]', space=smem, size = 0x4, offset = 0x4, fixed_abs, tag = 'smem constant byte address 0x4 - core index']
  #allocation1 [shape = 'u32[144,128]{1,0:T(1,128)}', space=vmem, size = 0x12000, scoped, tag = 'internal scratch']
  %s0 = inlined_call_operand.hbm [shape: f32[8,32], index: 0, kind: input, shape index: {}]
  %s1 = inlined_call_operand.hbm [shape: f32[8,8,32], index: 1, kind: input, shape index: {}]
  %s2 = inlined_call_operand.hbm [shape: bf16[32,32], index: 2, kind: input, shape index: {}]
  %s3 = inlined_call_operand.vmem [shape: f32[1,32], index: 3, kind: input, shape index: {}]
  %s4 = inlined_call_operand.hbm [shape: bf16[32,64], index: 4, kind: input, shape index: {}]
  %s5 = inlined_call_operand.vmem [shape: f32[1,64], index: 5, kind: input, shape index: {}]
  %s6 = inlined_call_operand.hbm [shape: f32[8,32], index: 6, kind: output, shape index: {0}]
  %s7 = inlined_call_operand.hbm [shape: f32[2,8,128], index: 7, kind: output, shape index: {1}]
  %8 = xla_tuple %s6, %s7
  %s9 = sld [smem:[#allocation0]]
  $region58: #{tpu_custom_call.1} parent=0
    _
  %s11 = ssub.s32 1, %s9
  %s12 = scalar_select 0, %s11, %s9
  $region1: #{tpu_custom_call.1} parent=0
    #allocation2 [shape = 'u8[4096]{0}', space=vmem, size = 0x1000, scoped, tag = 'input window, operand 0, single buffered']
    #allocation3 [shape = 's32[1]{0}', space=sflag, size = 0x4, scoped, tag = 'scoped memory for tpu_custom_call.1']
    #allocation4 [shape = 's32[1]{0}', space=sflag, size = 0x4, scoped, tag = 'scoped memory for tpu_custom_call.1']
    #allocation5 [shape = 'u8[32768]{0}', space=vmem, size = 0x8000, scoped, tag = 'input window, operand 1, single buffered']
    #allocation6 [shape = 's32[1]{0}', space=sflag, size = 0x4, scoped, tag = 'scoped memory for tpu_custom_call.1']
    #allocation7 [shape = 'u8[8192]{0}', space=vmem, size = 0x2000, scoped, tag = 'input window, operand 2, single buffered']
    #allocation8 [shape = 'u8[8192]{0}', space=vmem, size = 0x2000, scoped, tag = 'input window, operand 4, single buffered']
    #allocation9 [shape = 's32[1]{0}', space=sflag, size = 0x4, scoped, tag = 'scoped memory for tpu_custom_call.1']
    #allocation10 [shape = 'u8[4096]{0}', space=vmem, size = 0x1000, scoped, tag = 'output window, operand 0, single buffered']
    #allocation11 [shape = 'u8[8192]{0}', space=vmem, size = 0x2000, scoped, tag = 'output window, operand 1, single buffered']
    #allocation12 [shape = 's32[1]{0}', space=sflag, size = 0x4, scoped, tag = 'scoped memory for tpu_custom_call.1']
    %13 = vsyncpa [#allocation3], 0
    %14 = vsyncpa [#allocation6], 0
    %15 = vsyncpa [#allocation9], 0
    %16 = vsyncpa [#allocation4], 0
    %17 = vsyncpa [#allocation12], 0
    // Predicated region
    $region2: #{tpu_custom_call.1} parent=1 // pred_check
      _
    $region3: #{tpu_custom_call.1} parent=1 // pred_check_branch
      %19 = sbr.rel (0) target = $region5
    $region4: #{tpu_custom_call.1} parent=1 // pred_region
      %s21 = ssub.s32 128, 128
      %22 = vsyncadd [#allocation3], %s21
      %s24 = sshll.u32 [#allocation2], 4
      %s25 = int_to_ptr.vmem [resolvable:$true] %s24
      %27 = dma.hbm_to_vmem [thread:$0]  %s0, 128, %s25, [#allocation3]
    $region5: #{tpu_custom_call.1} parent=1 // pred_fallthru
      _
    // Predicated region
    $region6: #{tpu_custom_call.1} parent=1 // pred_check
      _
    $region7: #{tpu_custom_call.1} parent=1 // pred_check_branch
      %29 = sbr.rel (0) target = $region9
    $region8: #{tpu_custom_call.1} parent=1 // pred_region
      %s31 = ssub.s32 1024, 1024
      %32 = vsyncadd [#allocation6], %s31
      %s33 = sshll.u32 [#allocation5], 4
      %s34 = int_to_ptr.vmem [resolvable:$true] %s33
      %39 = dma.hbm_to_vmem [thread:$0]  %s1, 1024, %s34, [#allocation6], 128, 128, 8
    $region9: #{tpu_custom_call.1} parent=1 // pred_fallthru
      _
    // Predicated region
    $region10: #{tpu_custom_call.1} parent=1 // pred_check
      _
    $region11: #{tpu_custom_call.1} parent=1 // pred_check_branch
      %41 = sbr.rel (0) target = $region13
    $region12: #{tpu_custom_call.1} parent=1 // pred_region
      %s43 = ssub.s32 256, 256
      %44 = vsyncadd [#allocation6], %s43
      %s45 = sshll.u32 [#allocation7], 4
      %s46 = int_to_ptr.vmem [resolvable:$true] %s45
      %51 = dma.hbm_to_vmem [thread:$0]  %s2, 256, %s46, [#allocation6], 64, 64, 4
    $region13: #{tpu_custom_call.1} parent=1 // pred_fallthru
      _
    // Predicated region
    $region14: #{tpu_custom_call.1} parent=1 // pred_check
      _
    $region15: #{tpu_custom_call.1} parent=1 // pred_check_branch
      %53 = sbr.rel (0) target = $region17
    $region16: #{tpu_custom_call.1} parent=1 // pred_region
      _
    $region17: #{tpu_custom_call.1} parent=1 // pred_fallthru
      _
    // Predicated region
    $region18: #{tpu_custom_call.1} parent=1 // pred_check
      _
    $region19: #{tpu_custom_call.1} parent=1 // pred_check_branch
      %55 = sbr.rel (0) target = $region21
    $region20: #{tpu_custom_call.1} parent=1 // pred_region
      %s57 = ssub.s32 256, 256
      %58 = vsyncadd [#allocation9], %s57
      %s59 = sshll.u32 [#allocation8], 4
      %s60 = int_to_ptr.vmem [resolvable:$true] %s59
      %65 = dma.hbm_to_vmem [thread:$0]  %s4, 256, %s60, [#allocation9], 64, 64, 4
    $region21: #{tpu_custom_call.1} parent=1 // pred_fallthru
      _
    // Predicated region
    $region22: #{tpu_custom_call.1} parent=1 // pred_check
      _
    $region23: #{tpu_custom_call.1} parent=1 // pred_check_branch
      %67 = sbr.rel (0) target = $region25
    $region24: #{tpu_custom_call.1} parent=1 // pred_region
      _
    $region25: #{tpu_custom_call.1} parent=1 // pred_fallthru
      _
    // Predicated region
    $region26: #{tpu_custom_call.1} parent=1 // pred_check
      _
    $region27: #{tpu_custom_call.1} parent=1 // pred_check_branch
      %69 = sbr.rel (0) target = $region29
    $region28: #{tpu_custom_call.1} parent=1 // pred_region
      %70 = dma.done [#allocation3], 128
    $region29: #{tpu_custom_call.1} parent=1 // pred_fallthru
      _
    // Predicated region
    $region30: #{tpu_custom_call.1} parent=1 // pred_check
      _
    $region31: #{tpu_custom_call.1} parent=1 // pred_check_branch
      %72 = sbr.rel (0) target = $region33
    $region32: #{tpu_custom_call.1} parent=1 // pred_region
      %73 = dma.done [#allocation6], 1024
    $region33: #{tpu_custom_call.1} parent=1 // pred_fallthru
      _
    // Predicated region
    $region34: #{tpu_custom_call.1} parent=1 // pred_check
      _
    $region35: #{tpu_custom_call.1} parent=1 // pred_check_branch
      %75 = sbr.rel (0) target = $region37
    $region36: #{tpu_custom_call.1} parent=1 // pred_region
      %76 = dma.done [#allocation6], 256
    $region37: #{tpu_custom_call.1} parent=1 // pred_fallthru
      _
    // Predicated region
    $region38: #{tpu_custom_call.1} parent=1 // pred_check
      _
    $region39: #{tpu_custom_call.1} parent=1 // pred_check_branch
      %78 = sbr.rel (0) target = $region41
    $region40: #{tpu_custom_call.1} parent=1 // pred_region
      %79 = dma.done [#allocation9], 256
    $region41: #{tpu_custom_call.1} parent=1 // pred_fallthru
      _
    %v81 = vld [vmem:[#allocation2] sm:$0xff]
    %v82 = vld [vmem:[#allocation5] sm:$0xff]
    %v83 = vld [vmem:[#allocation5 + $0x8] sm:$0xff]
    %v84 = vld [vmem:[#allocation5 + $0x10] sm:$0xff]
    %v85 = vld [vmem:[#allocation5 + $0x18] sm:$0xff]
    %v86 = vld [vmem:[#allocation5 + $0x20] sm:$0xff]
    %v87 = vld [vmem:[#allocation5 + $0x28] sm:$0xff]
    %v88 = vld [vmem:[#allocation5 + $0x30] sm:$0xff]
    %v89 = vld [vmem:[#allocation5 + $0x38] sm:$0xff]
    %v90 = vpack.c.bf16 %v81, %v81
    %v91 = vld [vmem:[#allocation7] sm:$0xf]
    %v92 = vld [vmem:[#allocation7 + $0x4] sm:$0xf]
    %v93 = vld [vmem:[#allocation7 + $0x8] sm:$0xf]
    %v94 = vld [vmem:[#allocation7 + $0xc] sm:$0xf]
    %v95 = vld [vmem:[%s3] sm:$0x1]
    %v97 = vlaneseq
    %v98 = vshrl.u32 %v97, 7
    %v99 = vsub.s32 0, %v98
    %v100 = vrot.slane %v95, %v99
    %v106 = vunpack.c.l.b16 %v91
    %v107 = vunpack.c.l.b16 %v92
    %v108 = vunpack.c.l.b16 %v93
    %v109 = vunpack.c.l.b16 %v94
    %v110 = vpack.c.b16 %v107, %v106
    %v111 = vpack.c.b16 %v109, %v108
    %vm114 = vcmask 261120
    %v116 = vsel %vm114, %v90, 0
    %118 = vmatprep.subr.bf16.mxu0 0
    %119 = vmatpush1.bf16.msra.mxu0 %v110
    %120 = vmatprep.subr.bf16.mxu0 0
    %121 = vmatpush1.bf16.msra.mxu0 %v111
    %122 = vmatprep.subr.bf16.mxu0 0
    %123 = vmatpush1.bf16.msra.mxu0 0
    %124 = vmatprep.subr.bf16.mxu0 0
    %125 = vmatpush1.bf16.msra.mxu0 0
    %126 = vmatprep.subr.bf16.mxu0 0
    %127 = vmatpush1.bf16.msra.mxu0 0
    %128 = vmatprep.subr.bf16.mxu0 0
    %129 = vmatpush1.bf16.msra.mxu0 0
    %130 = vmatprep.subr.bf16.mxu0 0
    %131 = vmatpush1.bf16.msra.mxu0 0
    %132 = vmatprep.subr.bf16.mxu0 0
    %133 = vmatpush1.bf16.msra.mxu0 0
    %134 = vmatprep.subr.bf16.mxu0 0
    %135 = vmatpush1.bf16.msra.mxu0 0
    %136 = vmatprep.subr.bf16.mxu0 0
    %137 = vmatpush1.bf16.msra.mxu0 0
    %138 = vmatprep.subr.bf16.mxu0 0
    %139 = vmatpush1.bf16.msra.mxu0 0
    %140 = vmatprep.subr.bf16.mxu0 0
    %141 = vmatpush1.bf16.msra.mxu0 0
    %142 = vmatprep.subr.bf16.mxu0 0
    %143 = vmatpush1.bf16.msra.mxu0 0
    %144 = vmatprep.subr.bf16.mxu0 0
    %145 = vmatpush1.bf16.msra.mxu0 0
    %146 = vmatprep.subr.bf16.mxu0 0
    %147 = vmatpush1.bf16.msra.mxu0 0
    %148 = vmatprep.subr.bf16.mxu0 0
    %149 = vmatpush1.bf16.msra.mxu0 0
    %150 = vmatprep.mubr.bf16.mxu0 0
    %151 = vmatmul.mubr.bf16.gmra.mrb[0].mxu0 %v116
    %v152 = vpop.f32.mrb[0].mxu0
    %v153 = vadd.f32 %v100, %v152
    %v154 = vpop.f32.mrb[0].mxu0
    %v155 = vpop.f32.mrb[0].mxu0
    %v156 = vpop.f32.mrb[0].mxu0
    %157 = vdwg.mxu0
    %v158 = vmul.f32 %v153, 0.25
    %v159 = vpack.c.bf16 %v83, %v82
    %v160 = vpack.c.bf16 %v85, %v84
    %v161 = vpack.c.bf16 %v87, %v86
    %v162 = vpack.c.bf16 %v89, %v88
    %v163 = vld [vmem:[#allocation8] sm:$0xf]
    %v164 = vld [vmem:[#allocation8 + $0x4] sm:$0xf]
    %v165 = vld [vmem:[#allocation8 + $0x8] sm:$0xf]
    %v166 = vld [vmem:[#allocation8 + $0xc] sm:$0xf]
    %v167 = vld [vmem:[%s5] sm:$0x1]
    %v169 = vlaneseq
    %v170 = vshrl.u32 %v169, 7
    %v171 = vsub.s32 0, %v170
    %v172 = vrot.slane %v167, %v171
    %v178 = vunpack.c.l.b16 %v163
    %v179 = vunpack.c.l.b16 %v164
    %v180 = vunpack.c.l.b16 %v165
    %v181 = vunpack.c.l.b16 %v166
    %v182 = vpack.c.b16 %v179, %v178
    %v183 = vpack.c.b16 %v181, %v180
    %v187 = vsel %vm114, %v159, 0
    %v190 = vsel %vm114, %v160, 0
    %v193 = vsel %vm114, %v161, 0
    %v196 = vsel %vm114, %v162, 0
    %198 = vmatprep.subr.bf16.mxu0 0
    %199 = vmatpush1.bf16.msra.mxu0 %v182
    %200 = vmatprep.subr.bf16.mxu0 0
    %201 = vmatpush1.bf16.msra.mxu0 %v183
    %202 = vmatprep.subr.bf16.mxu0 0
    %203 = vmatpush1.bf16.msra.mxu0 0
    %204 = vmatprep.subr.bf16.mxu0 0
    %205 = vmatpush1.bf16.msra.mxu0 0
    %206 = vmatprep.subr.bf16.mxu0 0
    %207 = vmatpush1.bf16.msra.mxu0 0
    %208 = vmatprep.subr.bf16.mxu0 0
    %209 = vmatpush1.bf16.msra.mxu0 0
    %210 = vmatprep.subr.bf16.mxu0 0
    %211 = vmatpush1.bf16.msra.mxu0 0
    %212 = vmatprep.subr.bf16.mxu0 0
    %213 = vmatpush1.bf16.msra.mxu0 0
    %214 = vmatprep.subr.bf16.mxu0 0
    %215 = vmatpush1.bf16.msra.mxu0 0
    %216 = vmatprep.subr.bf16.mxu0 0
    %217 = vmatpush1.bf16.msra.mxu0 0
    %218 = vmatprep.subr.bf16.mxu0 0
    %219 = vmatpush1.bf16.msra.mxu0 0
    %220 = vmatprep.subr.bf16.mxu0 0
    %221 = vmatpush1.bf16.msra.mxu0 0
    %222 = vmatprep.subr.bf16.mxu0 0
    %223 = vmatpush1.bf16.msra.mxu0 0
    %224 = vmatprep.subr.bf16.mxu0 0
    %225 = vmatpush1.bf16.msra.mxu0 0
    %226 = vmatprep.subr.bf16.mxu0 0
    %227 = vmatpush1.bf16.msra.mxu0 0
    %228 = vmatprep.subr.bf16.mxu0 0
    %229 = vmatpush1.bf16.msra.mxu0 0
    %230 = vmatprep.mubr.bf16.mxu0 0
    %231 = vmatmul.mubr.bf16.gmra.mrb[0].mxu0 %v187
    %v232 = vpop.f32.mrb[0].mxu0
    %v233 = vadd.f32 %v172, %v232
    %v234 = vpop.f32.mrb[0].mxu0
    %v235 = vpop.f32.mrb[0].mxu0
    %v236 = vadd.f32 %v172, %v235
    %v237 = vpop.f32.mrb[0].mxu0
    %238 = vmatprep.mubr.bf16.mxu0 0
    %239 = vmatmul.mubr.bf16.gmra.mrb[0].mxu0 %v190
    %v240 = vpop.f32.mrb[0].mxu0
    %v241 = vadd.f32 %v172, %v240
    %v242 = vpop.f32.mrb[0].mxu0
    %v243 = vpop.f32.mrb[0].mxu0
    %v244 = vadd.f32 %v172, %v243
    %v245 = vpop.f32.mrb[0].mxu0
    %246 = vmatprep.mubr.bf16.mxu0 0
    %247 = vmatmul.mubr.bf16.gmra.mrb[0].mxu0 %v193
    %v248 = vpop.f32.mrb[0].mxu0
    %v249 = vadd.f32 %v172, %v248
    %v250 = vpop.f32.mrb[0].mxu0
    %v251 = vpop.f32.mrb[0].mxu0
    %v252 = vadd.f32 %v172, %v251
    %v253 = vpop.f32.mrb[0].mxu0
    %254 = vmatprep.mubr.bf16.mxu0 0
    %255 = vmatmul.mubr.bf16.gmra.mrb[0].mxu0 %v196
    %v256 = vpop.f32.mrb[0].mxu0
    %v257 = vadd.f32 %v172, %v256
    %v258 = vpop.f32.mrb[0].mxu0
    %v259 = vpop.f32.mrb[0].mxu0
    %v260 = vadd.f32 %v172, %v259
    %v261 = vpop.f32.mrb[0].mxu0
    %262 = vdwg.mxu0
    %v264 = vcombine.high %v158, %v158
    %v266 = vunpack.c.l.s4 1966171168
    %v267 = vunpack.c.0.s8 %v266
    %v268 = vlaneseq
    %v269 = vshrl.u32 %v268, 7
    %v270 = vsub.s32 %v267, %v269
    %v271 = vrot.slane %v158, %v270
    %v273 = vunpack.c.l.s4 1966171168
    %v274 = vunpack.c.0.s8 %v273
    %v275 = vlaneseq
    %v276 = vshrl.u32 %v275, 7
    %v277 = vsub.s32 %v274, %v276
    %v278 = vrot.slane %v264, %v277
    %v279 = vcombine.high %v271, %v271
    %v280 = vcombine.high %v278, %v278
    %v282 = vunpack.c.l.s4 1966171168
    %v283 = vunpack.c.0.s8 %v282
    %v284 = vlaneseq
    %v285 = vshrl.u32 %v284, 7
    %v286 = vsub.s32 %v283, %v285
    %v287 = vrot.slane %v271, %v286
    %v289 = vunpack.c.l.s4 1966171168
    %v290 = vunpack.c.0.s8 %v289
    %v291 = vlaneseq
    %v292 = vshrl.u32 %v291, 7
    %v293 = vsub.s32 %v290, %v292
    %v294 = vrot.slane %v278, %v293
    %v296 = vunpack.c.l.s4 1966171168
    %v297 = vunpack.c.0.s8 %v296
    %v298 = vlaneseq
    %v299 = vshrl.u32 %v298, 7
    %v300 = vsub.s32 %v297, %v299
    %v301 = vrot.slane %v279, %v300
    %v303 = vunpack.c.l.s4 1966171168
    %v304 = vunpack.c.0.s8 %v303
    %v305 = vlaneseq
    %v306 = vshrl.u32 %v305, 7
    %v307 = vsub.s32 %v304, %v306
    %v308 = vrot.slane %v280, %v307
    %v309 = vcombine.high %v287, %v287
    %v310 = vcombine.high %v294, %v294
    %v311 = vcombine.high %v301, %v301
    %v312 = vcombine.high %v308, %v308
    %v313 = vlaneseq
    %v314 = vshrl.u32 %v313, 7
    %v315 = vsub.s32 0, %v314
    %v316 = vrot.slane %v287, %v315
    %v317 = vlaneseq
    %v318 = vshrl.u32 %v317, 7
    %v319 = vsub.s32 0, %v318
    %v320 = vrot.slane %v301, %v319
    %v321 = vlaneseq
    %v322 = vshrl.u32 %v321, 7
    %v323 = vsub.s32 0, %v322
    %v324 = vrot.slane %v309, %v323
    %v325 = vlaneseq
    %v326 = vshrl.u32 %v325, 7
    %v327 = vsub.s32 0, %v326
    %v328 = vrot.slane %v311, %v327
    %v329 = vlaneseq
    %v330 = vshrl.u32 %v329, 7
    %v331 = vsub.s32 0, %v330
    %v332 = vrot.slane %v294, %v331
    %v333 = vlaneseq
    %v334 = vshrl.u32 %v333, 7
    %v335 = vsub.s32 0, %v334
    %v336 = vrot.slane %v308, %v335
    %v337 = vlaneseq
    %v338 = vshrl.u32 %v337, 7
    %v339 = vsub.s32 0, %v338
    %v340 = vrot.slane %v310, %v339
    %v341 = vlaneseq
    %v342 = vshrl.u32 %v341, 7
    %v343 = vsub.s32 0, %v342
    %v344 = vrot.slane %v312, %v343
    %v353 = vmul.f32 %v316, %v233
    %v354 = vmul.f32 %v320, %v236
    %v355 = vmul.f32 %v324, %v241
    %v356 = vmul.f32 %v328, %v244
    %v357 = vmul.f32 %v332, %v249
    %v358 = vmul.f32 %v336, %v252
    %v359 = vmul.f32 %v340, %v257
    %v360 = vmul.f32 %v344, %v260
    %vm361 = vcmask 130048
    %v362 = vsel %vm361, %v353, 0.0
    %363 = vadd.xlane.f32.xlu0 %v362
    %v364 = vpop.xlane.xlu0 %363
    %v365 = vsel %vm361, %v354, 0.0
    %366 = vadd.xlane.f32.xlu0 %v365
    %v367 = vpop.xlane.xlu0 %366
    %v368 = vsel %vm361, %v355, 0.0
    %369 = vadd.xlane.f32.xlu0 %v368
    %v370 = vpop.xlane.xlu0 %369
    %v371 = vsel %vm361, %v356, 0.0
    %372 = vadd.xlane.f32.xlu0 %v371
    %v373 = vpop.xlane.xlu0 %372
    %v374 = vsel %vm361, %v357, 0.0
    %375 = vadd.xlane.f32.xlu0 %v374
    %v376 = vpop.xlane.xlu0 %375
    %v377 = vsel %vm361, %v358, 0.0
    %378 = vadd.xlane.f32.xlu0 %v377
    %v379 = vpop.xlane.xlu0 %378
    %v380 = vsel %vm361, %v359, 0.0
    %381 = vadd.xlane.f32.xlu0 %v380
    %v382 = vpop.xlane.xlu0 %381
    %v383 = vsel %vm361, %v360, 0.0
    %384 = vadd.xlane.f32.xlu0 %v383
    %v385 = vpop.xlane.xlu0 %384
    %v394 = vlaneseq
    %v395 = vand.u32 %v394, 127
    %v396 = vlaneseq
    %v397 = vshrl.u32 %v396, 7
    %v398 = vsub.s32 %v395, %v397
    %v399 = vrot.slane %v364, %v398
    %v400 = vlaneseq
    %v401 = vshrl.u32 %v400, 7
    %v402 = vsub.s32 %v395, %v401
    %v403 = vrot.slane %v367, %v402
    %v404 = vlaneseq
    %v405 = vshrl.u32 %v404, 7
    %v406 = vsub.s32 %v395, %v405
    %v407 = vrot.slane %v370, %v406
    %v408 = vlaneseq
    %v409 = vshrl.u32 %v408, 7
    %v410 = vsub.s32 %v395, %v409
    %v411 = vrot.slane %v373, %v410
    %v412 = vlaneseq
    %v413 = vshrl.u32 %v412, 7
    %v414 = vsub.s32 %v395, %v413
    %v415 = vrot.slane %v376, %v414
    %v416 = vlaneseq
    %v417 = vshrl.u32 %v416, 7
    %v418 = vsub.s32 %v395, %v417
    %v419 = vrot.slane %v379, %v418
    %v420 = vlaneseq
    %v421 = vshrl.u32 %v420, 7
    %v422 = vsub.s32 %v395, %v421
    %v423 = vrot.slane %v382, %v422
    %v424 = vlaneseq
    %v425 = vshrl.u32 %v424, 7
    %v426 = vsub.s32 %v395, %v425
    %v427 = vrot.slane %v385, %v426
    %vm428 = vcmask 1041409
    %v429 = vsel %vm428, %v403, %v399
    %vm430 = vcmask 1042434
    %v431 = vsel %vm430, %v407, %v429
    %vm432 = vcmask 1043459
    %v433 = vsel %vm432, %v411, %v431
    %vm434 = vcmask 1044484
    %v435 = vsel %vm434, %v415, %v433
    %vm436 = vcmask 1045509
    %v437 = vsel %vm436, %v419, %v435
    %vm438 = vcmask 1046534
    %v439 = vsel %vm438, %v423, %v437
    %vm440 = vcmask 1047559
    %v441 = vsel %vm440, %v427, %v439
    %vm443 = vcmask 64512
    %v444 = vsel %vm443, %v441, -inf
    %445 = vmax.xlane.f32.xlu0 %v444
    %v446 = vpop.xlane.xlu0 %445
    %v448 = vlaneseq
    %v449 = vshrl.u32 %v448, 7
    %v450 = vsub.s32 0, %v449
    %v451 = vrot.slane %v446, %v450
    %v452 = vlaneseq
    %v453 = vshrl.u32 %v452, 7
    %v454 = vsub.s32 1, %v453
    %v455 = vrot.slane %v446, %v454
    %v456 = vlaneseq
    %v457 = vshrl.u32 %v456, 7
    %v458 = vsub.s32 2, %v457
    %v459 = vrot.slane %v446, %v458
    %v460 = vlaneseq
    %v461 = vshrl.u32 %v460, 7
    %v462 = vsub.s32 3, %v461
    %v463 = vrot.slane %v446, %v462
    %v464 = vlaneseq
    %v465 = vshrl.u32 %v464, 7
    %v466 = vsub.s32 4, %v465
    %v467 = vrot.slane %v446, %v466
    %v468 = vlaneseq
    %v469 = vshrl.u32 %v468, 7
    %v470 = vsub.s32 5, %v469
    %v471 = vrot.slane %v446, %v470
    %v472 = vlaneseq
    %v473 = vshrl.u32 %v472, 7
    %v474 = vsub.s32 6, %v473
    %v475 = vrot.slane %v446, %v474
    %v476 = vlaneseq
    %v477 = vshrl.u32 %v476, 7
    %v478 = vsub.s32 7, %v477
    %v479 = vrot.slane %v446, %v478
    %v488 = vsub.f32 %v364, %v451
    %v489 = vsub.f32 %v367, %v455
    %v490 = vsub.f32 %v370, %v459
    %v491 = vsub.f32 %v373, %v463
    %v492 = vsub.f32 %v376, %v467
    %v493 = vsub.f32 %v379, %v471
    %v494 = vsub.f32 %v382, %v475
    %v495 = vsub.f32 %v385, %v479
    %v496 = vmul.f32 %v488, 1.442695
    %v497 = vpow.pop %v496
    %v498 = vmul.f32 %v489, 1.442695
    %v499 = vpow.pop %v498
    %v500 = vmul.f32 %v490, 1.442695
    %v501 = vpow.pop %v500
    %v502 = vmul.f32 %v491, 1.442695
    %v503 = vpow.pop %v502
    %v504 = vmul.f32 %v492, 1.442695
    %v505 = vpow.pop %v504
    %v506 = vmul.f32 %v493, 1.442695
    %v507 = vpow.pop %v506
    %v508 = vmul.f32 %v494, 1.442695
    %v509 = vpow.pop %v508
    %v510 = vmul.f32 %v495, 1.442695
    %v511 = vpow.pop %v510
    %520 = vset.pattern.permute.xlu0 0
    %521 = vperm.xlu0 %520, %v497
    %v522 = vpop.permute.xlu0 %521
    %523 = vset.pattern.permute.xlu0 0
    %524 = vperm.xlu0 %523, %v499
    %v525 = vpop.permute.xlu0 %524
    %526 = vset.pattern.permute.xlu0 0
    %527 = vperm.xlu0 %526, %v501
    %v528 = vpop.permute.xlu0 %527
    %529 = vset.pattern.permute.xlu0 0
    %530 = vperm.xlu0 %529, %v503
    %v531 = vpop.permute.xlu0 %530
    %532 = vset.pattern.permute.xlu0 0
    %533 = vperm.xlu0 %532, %v505
    %v534 = vpop.permute.xlu0 %533
    %535 = vset.pattern.permute.xlu0 0
    %536 = vperm.xlu0 %535, %v507
    %v537 = vpop.permute.xlu0 %536
    %538 = vset.pattern.permute.xlu0 0
    %539 = vperm.xlu0 %538, %v509
    %v540 = vpop.permute.xlu0 %539
    %541 = vset.pattern.permute.xlu0 0
    %542 = vperm.xlu0 %541, %v511
    %v543 = vpop.permute.xlu0 %542
    %v544 = vlaneseq
    %v545 = vshrl.u32 %v544, 7
    %v546 = vsub.s32 %v395, %v545
    %v547 = vrot.slane %v522, %v546
    %v548 = vlaneseq
    %v549 = vshrl.u32 %v548, 7
    %v550 = vsub.s32 %v395, %v549
    %v551 = vrot.slane %v525, %v550
    %v552 = vlaneseq
    %v553 = vshrl.u32 %v552, 7
    %v554 = vsub.s32 %v395, %v553
    %v555 = vrot.slane %v528, %v554
    %v556 = vlaneseq
    %v557 = vshrl.u32 %v556, 7
    %v558 = vsub.s32 %v395, %v557
    %v559 = vrot.slane %v531, %v558
    %v560 = vlaneseq
    %v561 = vshrl.u32 %v560, 7
    %v562 = vsub.s32 %v395, %v561
    %v563 = vrot.slane %v534, %v562
    %v564 = vlaneseq
    %v565 = vshrl.u32 %v564, 7
    %v566 = vsub.s32 %v395, %v565
    %v567 = vrot.slane %v537, %v566
    %v568 = vlaneseq
    %v569 = vshrl.u32 %v568, 7
    %v570 = vsub.s32 %v395, %v569
    %v571 = vrot.slane %v540, %v570
    %v572 = vlaneseq
    %v573 = vshrl.u32 %v572, 7
    %v574 = vsub.s32 %v395, %v573
    %v575 = vrot.slane %v543, %v574
    %v576 = vsel %vm428, %v551, %v547
    %v577 = vsel %vm430, %v555, %v576
    %v578 = vsel %vm432, %v559, %v577
    %v579 = vsel %vm434, %v563, %v578
    %v580 = vsel %vm436, %v567, %v579
    %v581 = vsel %vm438, %v571, %v580
    %v582 = vsel %vm440, %v575, %v581
    %v584 = vsel %vm443, %v582, 0.0
    %585 = vadd.xlane.f32.xlu0 %v584
    %v586 = vpop.xlane.xlu0 %585
    %v587 = vrcp.pop %v586
    %v589 = vlaneseq
    %v590 = vshrl.u32 %v589, 7
    %v591 = vsub.s32 0, %v590
    %v592 = vrot.slane %v587, %v591
    %v593 = vlaneseq
    %v594 = vshrl.u32 %v593, 7
    %v595 = vsub.s32 1, %v594
    %v596 = vrot.slane %v587, %v595
    %v597 = vlaneseq
    %v598 = vshrl.u32 %v597, 7
    %v599 = vsub.s32 2, %v598
    %v600 = vrot.slane %v587, %v599
    %v601 = vlaneseq
    %v602 = vshrl.u32 %v601, 7
    %v603 = vsub.s32 3, %v602
    %v604 = vrot.slane %v587, %v603
    %v605 = vlaneseq
    %v606 = vshrl.u32 %v605, 7
    %v607 = vsub.s32 4, %v606
    %v608 = vrot.slane %v587, %v607
    %v609 = vlaneseq
    %v610 = vshrl.u32 %v609, 7
    %v611 = vsub.s32 5, %v610
    %v612 = vrot.slane %v587, %v611
    %v613 = vlaneseq
    %v614 = vshrl.u32 %v613, 7
    %v615 = vsub.s32 6, %v614
    %v616 = vrot.slane %v587, %v615
    %v617 = vlaneseq
    %v618 = vshrl.u32 %v617, 7
    %v619 = vsub.s32 7, %v618
    %v620 = vrot.slane %v587, %v619
    %v629 = vmul.f32 %v497, %v592
    %v630 = vmul.f32 %v499, %v596
    %v631 = vmul.f32 %v501, %v600
    %v632 = vmul.f32 %v503, %v604
    %v633 = vmul.f32 %v505, %v608
    %v634 = vmul.f32 %v507, %v612
    %v635 = vmul.f32 %v509, %v616
    %v636 = vmul.f32 %v511, %v620
    %645 = vset.pattern.permute.xlu0 0
    %646 = vperm.xlu0 %645, %v629
    %v647 = vpop.permute.xlu0 %646
    %648 = vset.pattern.permute.xlu0 0
    %649 = vperm.xlu0 %648, %v630
    %v650 = vpop.permute.xlu0 %649
    %651 = vset.pattern.permute.xlu0 0
    %652 = vperm.xlu0 %651, %v631
    %v653 = vpop.permute.xlu0 %652
    %654 = vset.pattern.permute.xlu0 0
    %655 = vperm.xlu0 %654, %v632
    %v656 = vpop.permute.xlu0 %655
    %657 = vset.pattern.permute.xlu0 0
    %658 = vperm.xlu0 %657, %v633
    %v659 = vpop.permute.xlu0 %658
    %660 = vset.pattern.permute.xlu0 0
    %661 = vperm.xlu0 %660, %v634
    %v662 = vpop.permute.xlu0 %661
    %663 = vset.pattern.permute.xlu0 0
    %664 = vperm.xlu0 %663, %v635
    %v665 = vpop.permute.xlu0 %664
    %666 = vset.pattern.permute.xlu0 0
    %667 = vperm.xlu0 %666, %v636
    %v668 = vpop.permute.xlu0 %667
    %v669 = vlaneseq
    %v670 = vshrl.u32 %v669, 7
    %v671 = vsub.s32 %v395, %v670
    %v672 = vrot.slane %v647, %v671
    %v673 = vlaneseq
    %v674 = vshrl.u32 %v673, 7
    %v675 = vsub.s32 %v395, %v674
    %v676 = vrot.slane %v650, %v675
    %v677 = vlaneseq
    %v678 = vshrl.u32 %v677, 7
    %v679 = vsub.s32 %v395, %v678
    %v680 = vrot.slane %v653, %v679
    %v681 = vlaneseq
    %v682 = vshrl.u32 %v681, 7
    %v683 = vsub.s32 %v395, %v682
    %v684 = vrot.slane %v656, %v683
    %v685 = vlaneseq
    %v686 = vshrl.u32 %v685, 7
    %v687 = vsub.s32 %v395, %v686
    %v688 = vrot.slane %v659, %v687
    %v689 = vlaneseq
    %v690 = vshrl.u32 %v689, 7
    %v691 = vsub.s32 %v395, %v690
    %v692 = vrot.slane %v662, %v691
    %v693 = vlaneseq
    %v694 = vshrl.u32 %v693, 7
    %v695 = vsub.s32 %v395, %v694
    %v696 = vrot.slane %v665, %v695
    %v697 = vlaneseq
    %v698 = vshrl.u32 %v697, 7
    %v699 = vsub.s32 %v395, %v698
    %v700 = vrot.slane %v668, %v699
    %v701 = vsel %vm428, %v676, %v672
    %v702 = vsel %vm430, %v680, %v701
    %v703 = vsel %vm432, %v684, %v702
    %v704 = vsel %vm434, %v688, %v703
    %v705 = vsel %vm436, %v692, %v704
    %v706 = vsel %vm438, %v696, %v705
    %v707 = vsel %vm440, %v700, %v706
    %v709 = vsel %vm443, %v707, 0.0
    %710 = vst [vmem:[#allocation11] sm:$0xff] %v709
    %727 = vrot.lane.b32.xlu0 %v353, 112
    %v728 = vpop.permute.xlu0 %727
    %729 = vrot.lane.b32.xlu0 %v354, 112
    %v730 = vpop.permute.xlu0 %729
    %731 = vrot.lane.b32.xlu0 %v355, 112
    %v732 = vpop.permute.xlu0 %731
    %733 = vrot.lane.b32.xlu0 %v356, 112
    %v734 = vpop.permute.xlu0 %733
    %735 = vrot.lane.b32.xlu0 %v357, 112
    %v736 = vpop.permute.xlu0 %735
    %737 = vrot.lane.b32.xlu0 %v358, 112
    %v738 = vpop.permute.xlu0 %737
    %739 = vrot.lane.b32.xlu0 %v359, 112
    %v740 = vpop.permute.xlu0 %739
    %741 = vrot.lane.b32.xlu0 %v360, 112
    %v742 = vpop.permute.xlu0 %741
    %v751 = vsel %vm361, %v728, 0.0
    %752 = vadd.xlane.f32.xlu0 %v751
    %v753 = vpop.xlane.xlu0 %752
    %v754 = vsel %vm361, %v730, 0.0
    %755 = vadd.xlane.f32.xlu0 %v754
    %v756 = vpop.xlane.xlu0 %755
    %v757 = vsel %vm361, %v732, 0.0
    %758 = vadd.xlane.f32.xlu0 %v757
    %v759 = vpop.xlane.xlu0 %758
    %v760 = vsel %vm361, %v734, 0.0
    %761 = vadd.xlane.f32.xlu0 %v760
    %v762 = vpop.xlane.xlu0 %761
    %v763 = vsel %vm361, %v736, 0.0
    %764 = vadd.xlane.f32.xlu0 %v763
    %v765 = vpop.xlane.xlu0 %764
    %v766 = vsel %vm361, %v738, 0.0
    %767 = vadd.xlane.f32.xlu0 %v766
    %v768 = vpop.xlane.xlu0 %767
    %v769 = vsel %vm361, %v740, 0.0
    %770 = vadd.xlane.f32.xlu0 %v769
    %v771 = vpop.xlane.xlu0 %770
    %v772 = vsel %vm361, %v742, 0.0
    %773 = vadd.xlane.f32.xlu0 %v772
    %v774 = vpop.xlane.xlu0 %773
    %v783 = vlaneseq
    %v784 = vshrl.u32 %v783, 7
    %v785 = vsub.s32 %v395, %v784
    %v786 = vrot.slane %v753, %v785
    %v787 = vlaneseq
    %v788 = vshrl.u32 %v787, 7
    %v789 = vsub.s32 %v395, %v788
    %v790 = vrot.slane %v756, %v789
    %v791 = vlaneseq
    %v792 = vshrl.u32 %v791, 7
    %v793 = vsub.s32 %v395, %v792
    %v794 = vrot.slane %v759, %v793
    %v795 = vlaneseq
    %v796 = vshrl.u32 %v795, 7
    %v797 = vsub.s32 %v395, %v796
    %v798 = vrot.slane %v762, %v797
    %v799 = vlaneseq
    %v800 = vshrl.u32 %v799, 7
    %v801 = vsub.s32 %v395, %v800
    %v802 = vrot.slane %v765, %v801
    %v803 = vlaneseq
    %v804 = vshrl.u32 %v803, 7
    %v805 = vsub.s32 %v395, %v804
    %v806 = vrot.slane %v768, %v805
    %v807 = vlaneseq
    %v808 = vshrl.u32 %v807, 7
    %v809 = vsub.s32 %v395, %v808
    %v810 = vrot.slane %v771, %v809
    %v811 = vlaneseq
    %v812 = vshrl.u32 %v811, 7
    %v813 = vsub.s32 %v395, %v812
    %v814 = vrot.slane %v774, %v813
    %v815 = vsel %vm428, %v790, %v786
    %v816 = vsel %vm430, %v794, %v815
    %v817 = vsel %vm432, %v798, %v816
    %v818 = vsel %vm434, %v802, %v817
    %v819 = vsel %vm436, %v806, %v818
    %v820 = vsel %vm438, %v810, %v819
    %v821 = vsel %vm440, %v814, %v820
    %v823 = vsel %vm443, %v821, -inf
    %824 = vmax.xlane.f32.xlu0 %v823
    %v825 = vpop.xlane.xlu0 %824
    %v827 = vlaneseq
    %v828 = vshrl.u32 %v827, 7
    %v829 = vsub.s32 0, %v828
    %v830 = vrot.slane %v825, %v829
    %v831 = vlaneseq
    %v832 = vshrl.u32 %v831, 7
    %v833 = vsub.s32 1, %v832
    %v834 = vrot.slane %v825, %v833
    %v835 = vlaneseq
    %v836 = vshrl.u32 %v835, 7
    %v837 = vsub.s32 2, %v836
    %v838 = vrot.slane %v825, %v837
    %v839 = vlaneseq
    %v840 = vshrl.u32 %v839, 7
    %v841 = vsub.s32 3, %v840
    %v842 = vrot.slane %v825, %v841
    %v843 = vlaneseq
    %v844 = vshrl.u32 %v843, 7
    %v845 = vsub.s32 4, %v844
    %v846 = vrot.slane %v825, %v845
    %v847 = vlaneseq
    %v848 = vshrl.u32 %v847, 7
    %v849 = vsub.s32 5, %v848
    %v850 = vrot.slane %v825, %v849
    %v851 = vlaneseq
    %v852 = vshrl.u32 %v851, 7
    %v853 = vsub.s32 6, %v852
    %v854 = vrot.slane %v825, %v853
    %v855 = vlaneseq
    %v856 = vshrl.u32 %v855, 7
    %v857 = vsub.s32 7, %v856
    %v858 = vrot.slane %v825, %v857
    %v867 = vsub.f32 %v753, %v830
    %v868 = vsub.f32 %v756, %v834
    %v869 = vsub.f32 %v759, %v838
    %v870 = vsub.f32 %v762, %v842
    %v871 = vsub.f32 %v765, %v846
    %v872 = vsub.f32 %v768, %v850
    %v873 = vsub.f32 %v771, %v854
    %v874 = vsub.f32 %v774, %v858
    %v875 = vmul.f32 %v867, 1.442695
    %v876 = vpow.pop %v875
    %v877 = vmul.f32 %v868, 1.442695
    %v878 = vpow.pop %v877
    %v879 = vmul.f32 %v869, 1.442695
    %v880 = vpow.pop %v879
    %v881 = vmul.f32 %v870, 1.442695
    %v882 = vpow.pop %v881
    %v883 = vmul.f32 %v871, 1.442695
    %v884 = vpow.pop %v883
    %v885 = vmul.f32 %v872, 1.442695
    %v886 = vpow.pop %v885
    %v887 = vmul.f32 %v873, 1.442695
    %v888 = vpow.pop %v887
    %v889 = vmul.f32 %v874, 1.442695
    %v890 = vpow.pop %v889
    %899 = vset.pattern.permute.xlu0 0
    %900 = vperm.xlu0 %899, %v876
    %v901 = vpop.permute.xlu0 %900
    %902 = vset.pattern.permute.xlu0 0
    %903 = vperm.xlu0 %902, %v878
    %v904 = vpop.permute.xlu0 %903
    %905 = vset.pattern.permute.xlu0 0
    %906 = vperm.xlu0 %905, %v880
    %v907 = vpop.permute.xlu0 %906
    %908 = vset.pattern.permute.xlu0 0
    %909 = vperm.xlu0 %908, %v882
    %v910 = vpop.permute.xlu0 %909
    %911 = vset.pattern.permute.xlu0 0
    %912 = vperm.xlu0 %911, %v884
    %v913 = vpop.permute.xlu0 %912
    %914 = vset.pattern.permute.xlu0 0
    %915 = vperm.xlu0 %914, %v886
    %v916 = vpop.permute.xlu0 %915
    %917 = vset.pattern.permute.xlu0 0
    %918 = vperm.xlu0 %917, %v888
    %v919 = vpop.permute.xlu0 %918
    %920 = vset.pattern.permute.xlu0 0
    %921 = vperm.xlu0 %920, %v890
    %v922 = vpop.permute.xlu0 %921
    %v923 = vlaneseq
    %v924 = vshrl.u32 %v923, 7
    %v925 = vsub.s32 %v395, %v924
    %v926 = vrot.slane %v901, %v925
    %v927 = vlaneseq
    %v928 = vshrl.u32 %v927, 7
    %v929 = vsub.s32 %v395, %v928
    %v930 = vrot.slane %v904, %v929
    %v931 = vlaneseq
    %v932 = vshrl.u32 %v931, 7
    %v933 = vsub.s32 %v395, %v932
    %v934 = vrot.slane %v907, %v933
    %v935 = vlaneseq
    %v936 = vshrl.u32 %v935, 7
    %v937 = vsub.s32 %v395, %v936
    %v938 = vrot.slane %v910, %v937
    %v939 = vlaneseq
    %v940 = vshrl.u32 %v939, 7
    %v941 = vsub.s32 %v395, %v940
    %v942 = vrot.slane %v913, %v941
    %v943 = vlaneseq
    %v944 = vshrl.u32 %v943, 7
    %v945 = vsub.s32 %v395, %v944
    %v946 = vrot.slane %v916, %v945
    %v947 = vlaneseq
    %v948 = vshrl.u32 %v947, 7
    %v949 = vsub.s32 %v395, %v948
    %v950 = vrot.slane %v919, %v949
    %v951 = vlaneseq
    %v952 = vshrl.u32 %v951, 7
    %v953 = vsub.s32 %v395, %v952
    %v954 = vrot.slane %v922, %v953
    %v955 = vsel %vm428, %v930, %v926
    %v956 = vsel %vm430, %v934, %v955
    %v957 = vsel %vm432, %v938, %v956
    %v958 = vsel %vm434, %v942, %v957
    %v959 = vsel %vm436, %v946, %v958
    %v960 = vsel %vm438, %v950, %v959
    %v961 = vsel %vm440, %v954, %v960
    %v963 = vsel %vm443, %v961, 0.0
    %964 = vadd.xlane.f32.xlu0 %v963
    %v965 = vpop.xlane.xlu0 %964
    %v966 = vrcp.pop %v965
    %v968 = vlaneseq
    %v969 = vshrl.u32 %v968, 7
    %v970 = vsub.s32 0, %v969
    %v971 = vrot.slane %v966, %v970
    %v972 = vlaneseq
    %v973 = vshrl.u32 %v972, 7
    %v974 = vsub.s32 1, %v973
    %v975 = vrot.slane %v966, %v974
    %v976 = vlaneseq
    %v977 = vshrl.u32 %v976, 7
    %v978 = vsub.s32 2, %v977
    %v979 = vrot.slane %v966, %v978
    %v980 = vlaneseq
    %v981 = vshrl.u32 %v980, 7
    %v982 = vsub.s32 3, %v981
    %v983 = vrot.slane %v966, %v982
    %v984 = vlaneseq
    %v985 = vshrl.u32 %v984, 7
    %v986 = vsub.s32 4, %v985
    %v987 = vrot.slane %v966, %v986
    %v988 = vlaneseq
    %v989 = vshrl.u32 %v988, 7
    %v990 = vsub.s32 5, %v989
    %v991 = vrot.slane %v966, %v990
    %v992 = vlaneseq
    %v993 = vshrl.u32 %v992, 7
    %v994 = vsub.s32 6, %v993
    %v995 = vrot.slane %v966, %v994
    %v996 = vlaneseq
    %v997 = vshrl.u32 %v996, 7
    %v998 = vsub.s32 7, %v997
    %v999 = vrot.slane %v966, %v998
    %v1008 = vmul.f32 %v876, %v971
    %v1009 = vmul.f32 %v878, %v975
    %v1010 = vmul.f32 %v880, %v979
    %v1011 = vmul.f32 %v882, %v983
    %v1012 = vmul.f32 %v884, %v987
    %v1013 = vmul.f32 %v886, %v991
    %v1014 = vmul.f32 %v888, %v995
    %v1015 = vmul.f32 %v890, %v999
    %1024 = vset.pattern.permute.xlu0 0
    %1025 = vperm.xlu0 %1024, %v1008
    %v1026 = vpop.permute.xlu0 %1025
    %1027 = vset.pattern.permute.xlu0 0
    %1028 = vperm.xlu0 %1027, %v1009
    %v1029 = vpop.permute.xlu0 %1028
    %1030 = vset.pattern.permute.xlu0 0
    %1031 = vperm.xlu0 %1030, %v1010
    %v1032 = vpop.permute.xlu0 %1031
    %1033 = vset.pattern.permute.xlu0 0
    %1034 = vperm.xlu0 %1033, %v1011
    %v1035 = vpop.permute.xlu0 %1034
    %1036 = vset.pattern.permute.xlu0 0
    %1037 = vperm.xlu0 %1036, %v1012
    %v1038 = vpop.permute.xlu0 %1037
    %1039 = vset.pattern.permute.xlu0 0
    %1040 = vperm.xlu0 %1039, %v1013
    %v1041 = vpop.permute.xlu0 %1040
    %1042 = vset.pattern.permute.xlu0 0
    %1043 = vperm.xlu0 %1042, %v1014
    %v1044 = vpop.permute.xlu0 %1043
    %1045 = vset.pattern.permute.xlu0 0
    %1046 = vperm.xlu0 %1045, %v1015
    %v1047 = vpop.permute.xlu0 %1046
    %v1048 = vlaneseq
    %v1049 = vshrl.u32 %v1048, 7
    %v1050 = vsub.s32 %v395, %v1049
    %v1051 = vrot.slane %v1026, %v1050
    %v1052 = vlaneseq
    %v1053 = vshrl.u32 %v1052, 7
    %v1054 = vsub.s32 %v395, %v1053
    %v1055 = vrot.slane %v1029, %v1054
    %v1056 = vlaneseq
    %v1057 = vshrl.u32 %v1056, 7
    %v1058 = vsub.s32 %v395, %v1057
    %v1059 = vrot.slane %v1032, %v1058
    %v1060 = vlaneseq
    %v1061 = vshrl.u32 %v1060, 7
    %v1062 = vsub.s32 %v395, %v1061
    %v1063 = vrot.slane %v1035, %v1062
    %v1064 = vlaneseq
    %v1065 = vshrl.u32 %v1064, 7
    %v1066 = vsub.s32 %v395, %v1065
    %v1067 = vrot.slane %v1038, %v1066
    %v1068 = vlaneseq
    %v1069 = vshrl.u32 %v1068, 7
    %v1070 = vsub.s32 %v395, %v1069
    %v1071 = vrot.slane %v1041, %v1070
    %v1072 = vlaneseq
    %v1073 = vshrl.u32 %v1072, 7
    %v1074 = vsub.s32 %v395, %v1073
    %v1075 = vrot.slane %v1044, %v1074
    %v1076 = vlaneseq
    %v1077 = vshrl.u32 %v1076, 7
    %v1078 = vsub.s32 %v395, %v1077
    %v1079 = vrot.slane %v1047, %v1078
    %v1080 = vsel %vm428, %v1055, %v1051
    %v1081 = vsel %vm430, %v1059, %v1080
    %v1082 = vsel %vm432, %v1063, %v1081
    %v1083 = vsel %vm434, %v1067, %v1082
    %v1084 = vsel %vm436, %v1071, %v1083
    %v1085 = vsel %vm438, %v1075, %v1084
    %v1086 = vsel %vm440, %v1079, %v1085
    %v1088 = vsel %vm443, %v1086, 0.0
    %s1089 = scalar_lea.vmem [#allocation11], 8
    %1090 = vst [vmem:[%s1089] sm:$0xff] %v1088
    %v1099 = vsel %vm361, %v647, %v1026
    %v1100 = vsel %vm361, %v650, %v1029
    %v1101 = vsel %vm361, %v653, %v1032
    %v1102 = vsel %vm361, %v656, %v1035
    %v1103 = vsel %vm361, %v659, %v1038
    %v1104 = vsel %vm361, %v662, %v1041
    %v1105 = vsel %vm361, %v665, %v1044
    %v1106 = vsel %vm361, %v668, %v1047
    %1115 = vrot.lane.b32.xlu0 %v233, 96
    %v1116 = vpop.permute.xlu0 %1115
    %1117 = vrot.lane.b32.xlu0 %v236, 96
    %v1118 = vpop.permute.xlu0 %1117
    %1119 = vrot.lane.b32.xlu0 %v241, 96
    %v1120 = vpop.permute.xlu0 %1119
    %1121 = vrot.lane.b32.xlu0 %v244, 96
    %v1122 = vpop.permute.xlu0 %1121
    %1123 = vrot.lane.b32.xlu0 %v249, 96
    %v1124 = vpop.permute.xlu0 %1123
    %1125 = vrot.lane.b32.xlu0 %v252, 96
    %v1126 = vpop.permute.xlu0 %1125
    %1127 = vrot.lane.b32.xlu0 %v257, 96
    %v1128 = vpop.permute.xlu0 %1127
    %1129 = vrot.lane.b32.xlu0 %v260, 96
    %v1130 = vpop.permute.xlu0 %1129
    %v1139 = vmul.f32 %v1099, %v1116
    %v1140 = vmul.f32 %v1100, %v1118
    %v1141 = vmul.f32 %v1101, %v1120
    %v1142 = vmul.f32 %v1102, %v1122
    %v1143 = vmul.f32 %v1103, %v1124
    %v1144 = vmul.f32 %v1104, %v1126
    %v1145 = vmul.f32 %v1105, %v1128
    %v1146 = vmul.f32 %v1106, %v1130
    %v1147 = vsel %vm114, %v1139, 0.0
    %v1148 = vrot.slane %v1147, 4
    %v1149 = vadd.f32 %v1147, %v1148
    %v1150 = vrot.slane %v1149, 2
    %v1151 = vadd.f32 %v1149, %v1150
    %v1152 = vrot.slane %v1151, 1
    %v1153 = vadd.f32 %v1151, %v1152
    %v1154 = vsel %vm114, %v1140, 0.0
    %v1155 = vrot.slane %v1154, 4
    %v1156 = vadd.f32 %v1154, %v1155
    %v1157 = vrot.slane %v1156, 2
    %v1158 = vadd.f32 %v1156, %v1157
    %v1159 = vrot.slane %v1158, 1
    %v1160 = vadd.f32 %v1158, %v1159
    %v1161 = vsel %vm114, %v1141, 0.0
    %v1162 = vrot.slane %v1161, 4
    %v1163 = vadd.f32 %v1161, %v1162
    %v1164 = vrot.slane %v1163, 2
    %v1165 = vadd.f32 %v1163, %v1164
    %v1166 = vrot.slane %v1165, 1
    %v1167 = vadd.f32 %v1165, %v1166
    %v1168 = vsel %vm114, %v1142, 0.0
    %v1169 = vrot.slane %v1168, 4
    %v1170 = vadd.f32 %v1168, %v1169
    %v1171 = vrot.slane %v1170, 2
    %v1172 = vadd.f32 %v1170, %v1171
    %v1173 = vrot.slane %v1172, 1
    %v1174 = vadd.f32 %v1172, %v1173
    %v1175 = vsel %vm114, %v1143, 0.0
    %v1176 = vrot.slane %v1175, 4
    %v1177 = vadd.f32 %v1175, %v1176
    %v1178 = vrot.slane %v1177, 2
    %v1179 = vadd.f32 %v1177, %v1178
    %v1180 = vrot.slane %v1179, 1
    %v1181 = vadd.f32 %v1179, %v1180
    %v1182 = vsel %vm114, %v1144, 0.0
    %v1183 = vrot.slane %v1182, 4
    %v1184 = vadd.f32 %v1182, %v1183
    %v1185 = vrot.slane %v1184, 2
    %v1186 = vadd.f32 %v1184, %v1185
    %v1187 = vrot.slane %v1186, 1
    %v1188 = vadd.f32 %v1186, %v1187
    %v1189 = vsel %vm114, %v1145, 0.0
    %v1190 = vrot.slane %v1189, 4
    %v1191 = vadd.f32 %v1189, %v1190
    %v1192 = vrot.slane %v1191, 2
    %v1193 = vadd.f32 %v1191, %v1192
    %v1194 = vrot.slane %v1193, 1
    %v1195 = vadd.f32 %v1193, %v1194
    %v1196 = vsel %vm114, %v1146, 0.0
    %v1197 = vrot.slane %v1196, 4
    %v1198 = vadd.f32 %v1196, %v1197
    %v1199 = vrot.slane %v1198, 2
    %v1200 = vadd.f32 %v1198, %v1199
    %v1201 = vrot.slane %v1200, 1
    %v1202 = vadd.f32 %v1200, %v1201
    %v1211 = vsel %vm428, %v1160, %v1153
    %v1212 = vsel %vm430, %v1167, %v1211
    %v1213 = vsel %vm432, %v1174, %v1212
    %v1214 = vsel %vm434, %v1181, %v1213
    %v1215 = vsel %vm436, %v1188, %v1214
    %v1216 = vsel %vm438, %v1195, %v1215
    %v1217 = vsel %vm440, %v1202, %v1216
    %1219 = vst.msk [vmem:[#allocation10] sm:$0xff] %vm114, %v1217
    // Predicated region
    $region42: #{tpu_custom_call.1} parent=1 // pred_check
      _
    $region43: #{tpu_custom_call.1} parent=1 // pred_check_branch
      %1221 = sbr.rel (0) target = $region45
    $region44: #{tpu_custom_call.1} parent=1 // pred_region
      %s1223 = ssub.s32 128, 128
      %1224 = vsyncadd [#allocation4], %s1223
      %s1226 = sshll.u32 [#allocation10], 4
      %s1227 = int_to_ptr.vmem [resolvable:$true] %s1226
      %1229 = dma.vmem_to_hbm [thread:$0]  %s1227, 128, %s6, [#allocation4]
    $region45: #{tpu_custom_call.1} parent=1 // pred_fallthru
      _
    // Predicated region
    $region46: #{tpu_custom_call.1} parent=1 // pred_check
      _
    $region47: #{tpu_custom_call.1} parent=1 // pred_check_branch
      %1231 = sbr.rel (0) target = $region49
    $region48: #{tpu_custom_call.1} parent=1 // pred_region
      %s1233 = ssub.s32 256, 256
      %1234 = vsyncadd [#allocation12], %s1233
      %s1235 = sshll.u32 [#allocation11], 4
      %s1236 = int_to_ptr.vmem [resolvable:$true] %s1235
      %1241 = dma.vmem_to_hbm [thread:$0]  %s1236, 256, %s7, [#allocation12], 128, 128, 8
    $region49: #{tpu_custom_call.1} parent=1 // pred_fallthru
      _
    // Predicated region
    $region50: #{tpu_custom_call.1} parent=1 // pred_check
      _
    $region51: #{tpu_custom_call.1} parent=1 // pred_check_branch
      %1243 = sbr.rel (0) target = $region53
    $region52: #{tpu_custom_call.1} parent=1 // pred_region
      %1244 = dma.done [#allocation4], 128
    $region53: #{tpu_custom_call.1} parent=1 // pred_fallthru
      _
    // Predicated region
    $region54: #{tpu_custom_call.1} parent=1 // pred_check
      _
    $region55: #{tpu_custom_call.1} parent=1 // pred_check_branch
      %1246 = sbr.rel (0) target = $region57
    $region56: #{tpu_custom_call.1} parent=1 // pred_region
      %1247 = dma.done [#allocation12], 256
    $region57: #{tpu_custom_call.1} parent=1 // pred_fallthru
      _
    %1248 = vsyncpa [#allocation3], 1
    %1249 = vsyncpa [#allocation6], 1
    %1250 = vsyncpa [#allocation9], 1
    %1251 = vsyncpa [#allocation4], 1
    %1252 = vsyncpa [#allocation12], 1

</llo_original>
